<compile_context>
chip_gen: v5e
topology: v5e:2x2
jax: 0.10.0
libtpu: 0.0.40
codegen_flags: <defaults>
</compile_context>

<pallas_src>
import functools
import math

import jax
import jax.numpy as jnp
from jax import lax
from jax.experimental import pallas as pl
from jax.experimental.pallas import tpu as pltpu


def _round_up(x, m):
    return ((x + m - 1) // m) * m


def _bert_output_kernel(x_ref, res_ref, wT_ref, b_ref, gamma_ref, beta_ref,
                        out_ref, *, eps, matmul_dtype):
    # Cast the activation tile in-kernel: if the input is already bf16 this is
    # a no-op; if it is f32 this avoids an extra HBM pass a wrapper-side cast
    # would have emitted.
    x = x_ref[...].astype(matmul_dtype)        # (TM, I)
    wT = wT_ref[...]                           # (I, H), already matmul_dtype
    b = b_ref[...]                             # (1, H)  f32
    gamma = gamma_ref[...]                     # (1, H)  f32
    beta = beta_ref[...]                       # (1, H)  f32

    # ---- dense: x @ W^T + b   (MXU, f32 accumulation)
    h = jnp.dot(x, wT, preferred_element_type=jnp.float32) + b

    # ---- dropout == identity at inference; residual add
    y = h + res_ref[...].astype(jnp.float32)   # (TM, H) f32

    # ---- BertLayerNorm (TF style: eps inside the sqrt), f32 epilogue.
    # Two-pass centered form kept for numerical parity with the PyTorch module;
    # the one-pass E[y^2]-mean^2 variant is only worth it if the epilogue binds.
    mean = jnp.mean(y, axis=-1, keepdims=True)
    centered = y - mean
    var = jnp.mean(centered * centered, axis=-1, keepdims=True)
    inv = lax.rsqrt(var + eps)                 # EUP, its own VLIW slot
    out_ref[...] = (centered * inv * gamma + beta).astype(out_ref.dtype)


def prepare_bert_output_params(params, *, matmul_dtype=jnp.bfloat16):
    """One-time parameter prep (call at init, NOT per forward pass).

    Transposes nn.Linear's (H, I) weight to (I, H) and casts it to the matmul
    dtype once, so no transpose / cast is emitted inside the hot path.
    """
    H, I = params["dense_w"].shape
    return {
        "wT": jnp.asarray(params["dense_w"]).T.astype(matmul_dtype),   # (I, H)
        "b": params["dense_b"].reshape(1, H).astype(jnp.float32),
        "gamma": params["ln_w"].reshape(1, H).astype(jnp.float32),
        "beta": params["ln_b"].reshape(1, H).astype(jnp.float32),
    }


def bert_output_pallas(hidden_states, input_tensor, prepared, *, eps=1e-12,
                       block_rows=256, out_dtype=jnp.float32):
    """hidden_states: (B, S, I), input_tensor: (B, S, H) -> (B, S, H) out_dtype."""
    B, S, I = hidden_states.shape
    H = input_tensor.shape[-1]
    M = B * S

    x = hidden_states.reshape(M, I)
    res = input_tensor.reshape(M, H)
    wT = prepared["wT"]
    b = prepared["b"]
    gamma = prepared["gamma"]
    beta = prepared["beta"]
    matmul_dtype = wT.dtype

    # Row tile: as large as requested (default 256 = real MXU tile, multiple of
    # 16 so bf16 rows pack sublanes), but never larger than the (sublane-
    # rounded) row count.  No padding of the tensors themselves: the grid is
    # cdiv(M, TM) and Pallas masks the tail block's out-of-bounds rows.
    TM = max(8, min(_round_up(block_rows, 8), _round_up(M, 8)))
    grid_m = pl.cdiv(M, TM)

    rows = lambda i: (i, 0)      # row-tiled operands
    fixed = lambda i: (0, 0)     # grid-invariant operands (fetched once)

    # VMEM budget from the actual tile footprint (conservatively charges two
    # buffers for the grid-invariant weight), with headroom for f32 epilogue
    # temporaries.  Raising the scoped limit explicitly lets the large tiles
    # compile on v5e (16 MiB default) / v6e-v7x (32 MiB default).
    isz = lambda dt: jnp.dtype(dt).itemsize
    est = (2 * I * H * isz(matmul_dtype)          # resident weight (x2 buffers)
           + 2 * TM * I * isz(x.dtype)            # activation tiles
           + 2 * TM * H * isz(res.dtype)          # residual tiles
           + 2 * TM * H * isz(out_dtype)          # output tiles
           + 4 * TM * H * 4                       # f32 LN temporaries
           + 8 * H * 4)                           # bias / gamma / beta
    vmem_limit = int(min(max(est * 1.5, 32 * 1024 * 1024), 112 * 1024 * 1024))

    kernel = functools.partial(_bert_output_kernel, eps=eps,
                               matmul_dtype=matmul_dtype)
    out = pl.pallas_call(
        kernel,
        out_shape=jax.ShapeDtypeStruct((M, H), out_dtype),
        grid_spec=pltpu.PrefetchScalarGridSpec(
            num_scalar_prefetch=0,
            grid=(grid_m,),
            in_specs=[
                pl.BlockSpec((TM, I), rows),   # activations
                pl.BlockSpec((TM, H), rows),   # residual
                pl.BlockSpec((I, H), fixed),   # dense weight^T (resident)
                pl.BlockSpec((1, H), fixed),   # dense bias
                pl.BlockSpec((1, H), fixed),   # LayerNorm gamma
                pl.BlockSpec((1, H), fixed),   # LayerNorm beta
            ],
            out_specs=pl.BlockSpec((TM, H), rows),
        ),
        compiler_params=pltpu.CompilerParams(
            dimension_semantics=("parallel",),   # row tiles shard across TCs
            vmem_limit_bytes=vmem_limit),
    )(x, res, wT, b, gamma, beta)

    return out.reshape(B, S, H)


def bert_output_reference(hidden_states, input_tensor, p, eps=1e-12):
    """Pure-JAX replica of the PyTorch forward (eval mode) for verification."""
    h = jnp.einsum("bsi,hi->bsh", hidden_states, p["dense_w"]) + p["dense_b"]
    y = h + input_tensor
    u = jnp.mean(y, axis=-1, keepdims=True)
    s = jnp.mean((y - u) ** 2, axis=-1, keepdims=True)
    yn = (y - u) / jnp.sqrt(s + eps)
    return p["ln_w"] * yn + p["ln_b"]


def make_params(key, intermediate, hidden):
    """Synthetic params matching nn.Linear / BertLayerNorm default init."""
    k_w, k_b = jax.random.split(key, 2)
    bound = 1.0 / math.sqrt(intermediate)
    return {
        "dense_w": jax.random.uniform(k_w, (hidden, intermediate), jnp.float32,
                                      -bound, bound),
        "dense_b": jax.random.uniform(k_b, (hidden,), jnp.float32, -bound, bound),
        "ln_w": jnp.ones((hidden,), jnp.float32),
        "ln_b": jnp.zeros((hidden,), jnp.float32),
    }


if __name__ == "__main__":
    # Small BERT-like shapes; hidden=128 keeps the output lane-dense,
    # intermediate = 4 * hidden as in BERT configs.
    B, S, H, I = 2, 8, 128, 512

    root = jax.random.PRNGKey(0)
    k_x, k_r, k_p = jax.random.split(root, 3)

    hidden_states = jax.random.normal(k_x, (B, S, I), jnp.float32)
    input_tensor = jax.random.normal(k_r, (B, S, H), jnp.float32)
    params = make_params(k_p, I, H)

    ref = bert_output_reference(hidden_states, input_tensor, params)

    # Default path: bf16 matmul operands (cast in-kernel / prepped weight),
    # f32 accumulation and LN epilogue.  TM clamps to 16 rows at this tiny M.
    prep_bf16 = prepare_bert_output_params(params, matmul_dtype=jnp.bfloat16)
    out = bert_output_pallas(hidden_states, input_tensor, prep_bf16)
    out = jax.block_until_ready(out)
    assert out.shape == (B, S, H)
    assert jnp.allclose(out, ref, atol=5e-2, rtol=5e-2), (
        float(jnp.max(jnp.abs(out - ref))))

    # f32 path with an 8-row tile -> 2-step row grid, exercising the pipeline
    # across multiple grid steps with the resident weight.
    prep_f32 = prepare_bert_output_params(params, matmul_dtype=jnp.float32)
    out32 = bert_output_pallas(hidden_states, input_tensor, prep_f32,
                               block_rows=8)
    out32 = jax.block_until_ready(out32)
    assert jnp.allclose(out32, ref, atol=1e-2, rtol=1e-2), (
        float(jnp.max(jnp.abs(out32 - ref))))

    # Ragged row count (M = 10, not a multiple of the 8-row tile): no jnp.pad
    # copy is made; the tail block's out-of-bounds rows are masked by Pallas.
    hs2 = jax.random.normal(k_x, (2, 5, I), jnp.float32)
    it2 = jax.random.normal(k_r, (2, 5, H), jnp.float32)
    ref2 = bert_output_reference(hs2, it2, params)
    out2 = bert_output_pallas(hs2, it2, prep_f32, block_rows=8)
    out2 = jax.block_until_ready(out2)
    assert out2.shape == (2, 5, H)
    assert jnp.allclose(out2, ref2, atol=1e-2, rtol=1e-2), (
        float(jnp.max(jnp.abs(out2 - ref2))))

    print("KERNEL_OK")
</pallas_src>

<mosaic_0001>
module attributes {stable_mosaic.version = 11 : i64} {
  func.func @_bert_output_kernel(%arg0: i32, %arg1: memref<16x512xf32, #tpu.memory_space<vmem>>, %arg2: memref<16x128xf32, #tpu.memory_space<vmem>>, %arg3: memref<512x128xbf16, #tpu.memory_space<vmem>>, %arg4: memref<1x128xf32, #tpu.memory_space<vmem>>, %arg5: memref<1x128xf32, #tpu.memory_space<vmem>>, %arg6: memref<1x128xf32, #tpu.memory_space<vmem>>, %arg7: memref<16x128xf32, #tpu.memory_space<vmem>>) attributes {dimension_semantics = [#tpu.dimension_semantics<parallel>], iteration_bounds = array<i64: 1>, scalar_prefetch = 0 : i64, scratch_operands = 0 : i64, tpu.core_type = #tpu.core_type<tc>, window_params = [{transform_indices = @transform_0, window_bounds = array<i64: 16, 512>}, {transform_indices = @transform_1, window_bounds = array<i64: 16, 128>}, {pipeline_mode = #tpu.pipeline_mode<synchronous>, transform_indices = @transform_2, window_bounds = array<i64: 512, 128>}, {pipeline_mode = #tpu.pipeline_mode<synchronous>, transform_indices = @transform_3, window_bounds = array<i64: 1, 128>}, {pipeline_mode = #tpu.pipeline_mode<synchronous>, transform_indices = @transform_4, window_bounds = array<i64: 1, 128>}, {pipeline_mode = #tpu.pipeline_mode<synchronous>, transform_indices = @transform_5, window_bounds = array<i64: 1, 128>}, {transform_indices = @transform_6, window_bounds = array<i64: 16, 128>}]} {
    %c0 = arith.constant 0 : index
    %c0_0 = arith.constant 0 : index
    %0 = vector.load %arg1[%c0, %c0_0] : memref<16x512xf32, #tpu.memory_space<vmem>>, vector<16x512xf32>
    %1 = arith.truncf %0 : vector<16x512xf32> to vector<16x512xbf16>
    %c0_1 = arith.constant 0 : index
    %c0_2 = arith.constant 0 : index
    %2 = vector.load %arg3[%c0_1, %c0_2] : memref<512x128xbf16, #tpu.memory_space<vmem>>, vector<512x128xbf16>
    %c0_3 = arith.constant 0 : index
    %c0_4 = arith.constant 0 : index
    %3 = vector.load %arg4[%c0_3, %c0_4] : memref<1x128xf32, #tpu.memory_space<vmem>>, vector<1x128xf32>
    %c0_5 = arith.constant 0 : index
    %c0_6 = arith.constant 0 : index
    %4 = vector.load %arg5[%c0_5, %c0_6] : memref<1x128xf32, #tpu.memory_space<vmem>>, vector<1x128xf32>
    %c0_7 = arith.constant 0 : index
    %c0_8 = arith.constant 0 : index
    %5 = vector.load %arg6[%c0_7, %c0_8] : memref<1x128xf32, #tpu.memory_space<vmem>>, vector<1x128xf32>
    %cst = arith.constant dense<0.000000e+00> : vector<16x128xf32>
    %6 = tpu.matmul %1, %2, %cst {dimension_numbers = #tpu.dot_dimension_numbers<[1], [0], [0], [1], [0, 0, 1, 1], [], []>} : vector<16x512xbf16>, vector<512x128xbf16>, vector<16x128xf32> -> vector<16x128xf32>
    %7 = vector.broadcast %3 : vector<1x128xf32> to vector<16x128xf32>
    %8 = arith.addf %6, %7 : vector<16x128xf32>
    %c0_9 = arith.constant 0 : index
    %c0_10 = arith.constant 0 : index
    %9 = vector.load %arg2[%c0_9, %c0_10] : memref<16x128xf32, #tpu.memory_space<vmem>>, vector<16x128xf32>
    %10 = arith.addf %8, %9 : vector<16x128xf32>
    %cst_11 = arith.constant dense<0.000000e+00> : vector<16xf32>
    %11 = vector.multi_reduction <add>, %10, %cst_11 [1] : vector<16x128xf32> to vector<16xf32>
    %12 = vector.shape_cast %11 : vector<16xf32> to vector<16x1xf32>
    %cst_12 = arith.constant 1.280000e+02 : f32
    %13 = vector.broadcast %cst_12 : f32 to vector<16x1xf32>
    %14 = arith.divf %12, %13 : vector<16x1xf32>
    %15 = vector.broadcast %14 : vector<16x1xf32> to vector<16x128xf32>
    %16 = arith.subf %10, %15 : vector<16x128xf32>
    %17 = arith.mulf %16, %16 : vector<16x128xf32>
    %cst_13 = arith.constant dense<0.000000e+00> : vector<16xf32>
    %18 = vector.multi_reduction <add>, %17, %cst_13 [1] : vector<16x128xf32> to vector<16xf32>
    %19 = vector.shape_cast %18 : vector<16xf32> to vector<16x1xf32>
    %cst_14 = arith.constant 1.280000e+02 : f32
    %20 = vector.broadcast %cst_14 : f32 to vector<16x1xf32>
    %21 = arith.divf %19, %20 : vector<16x1xf32>
    %cst_15 = arith.constant 9.99999996E-13 : f32
    %22 = vector.broadcast %cst_15 : f32 to vector<16x1xf32>
    %23 = arith.addf %21, %22 : vector<16x1xf32>
    %24 = math.rsqrt %23 : vector<16x1xf32>
    %25 = vector.broadcast %24 : vector<16x1xf32> to vector<16x128xf32>
    %26 = arith.mulf %16, %25 : vector<16x128xf32>
    %27 = vector.broadcast %4 : vector<1x128xf32> to vector<16x128xf32>
    %28 = arith.mulf %26, %27 : vector<16x128xf32>
    %29 = vector.broadcast %5 : vector<1x128xf32> to vector<16x128xf32>
    %30 = arith.addf %28, %29 : vector<16x128xf32>
    %c0_16 = arith.constant 0 : index
    %c0_17 = arith.constant 0 : index
    %31 = vector.load %arg7[%c0_16, %c0_17] : memref<16x128xf32, #tpu.memory_space<vmem>>, vector<16x128xf32>
    tpu.vector_store %arg7[%c0_16, %c0_17], %30 {strides = array<i32>} : memref<16x128xf32, #tpu.memory_space<vmem>>, vector<16x128xf32>,
    return
  }
  func.func @transform_0(%arg0: i32) -> (i32, i32) {
    %c0_i32 = arith.constant 0 : i32
    %c0_i32_0 = arith.constant 0 : i32
    return %arg0, %c0_i32 : i32, i32
  }
  func.func @transform_1(%arg0: i32) -> (i32, i32) {
    %c0_i32 = arith.constant 0 : i32
    %c0_i32_0 = arith.constant 0 : i32
    return %arg0, %c0_i32 : i32, i32
  }
  func.func @transform_2(%arg0: i32) -> (i32, i32) {
    %c0_i32 = arith.constant 0 : i32
    %c0_i32_0 = arith.constant 0 : i32
    %c0_i32_1 = arith.constant 0 : i32
    return %c0_i32, %c0_i32_0 : i32, i32
  }
  func.func @transform_3(%arg0: i32) -> (i32, i32) {
    %c0_i32 = arith.constant 0 : i32
    %c0_i32_0 = arith.constant 0 : i32
    %c0_i32_1 = arith.constant 0 : i32
    return %c0_i32, %c0_i32_0 : i32, i32
  }
  func.func @transform_4(%arg0: i32) -> (i32, i32) {
    %c0_i32 = arith.constant 0 : i32
    %c0_i32_0 = arith.constant 0 : i32
    %c0_i32_1 = arith.constant 0 : i32
    return %c0_i32, %c0_i32_0 : i32, i32
  }
  func.func @transform_5(%arg0: i32) -> (i32, i32) {
    %c0_i32 = arith.constant 0 : i32
    %c0_i32_0 = arith.constant 0 : i32
    %c0_i32_1 = arith.constant 0 : i32
    return %c0_i32, %c0_i32_0 : i32, i32
  }
  func.func @transform_6(%arg0: i32) -> (i32, i32) {
    %c0_i32 = arith.constant 0 : i32
    %c0_i32_0 = arith.constant 0 : i32
    return %arg0, %c0_i32 : i32, i32
  }
}

</mosaic_0001>

<llo_original>
// kernel: tpu_custom_call.1
$region0: #{tpu_custom_call.1}
  #allocation0 [shape = 'u32[]', space=smem, size = 0x4, offset = 0x4, fixed_abs, tag = 'smem constant byte address 0x4 - core index']
  #allocation1 [shape = 'u32[72,128]{1,0:T(1,128)}', space=vmem, size = 0x9000, scoped, tag = 'internal scratch']
  %s0 = inlined_call_operand.hbm [shape: f32[16,512], index: 0, kind: input, shape index: {}]
  %s1 = inlined_call_operand.hbm [shape: f32[16,128], index: 1, kind: input, shape index: {}]
  %s2 = inlined_call_operand.hbm [shape: bf16[512,128], index: 2, kind: input, shape index: {}]
  %s3 = inlined_call_operand.vmem [shape: f32[1,128], index: 3, kind: input, shape index: {}]
  %s4 = inlined_call_operand.vmem [shape: f32[1,128], index: 4, kind: input, shape index: {}]
  %s5 = inlined_call_operand.vmem [shape: f32[1,128], index: 5, kind: input, shape index: {}]
  %s6 = inlined_call_operand.hbm [shape: f32[16,128], index: 6, kind: output, shape index: {}]
  %s7 = sld [smem:[#allocation0]]
  $region46: #{tpu_custom_call.1} parent=0
    _
  %s9 = ssub.s32 1, %s7
  %s10 = scalar_select 0, %s9, %s7
  $region1: #{tpu_custom_call.1} parent=0
    #allocation2 [shape = 'u8[32768]{0}', space=vmem, size = 0x8000, scoped, tag = 'input window, operand 0, single buffered']
    #allocation3 [shape = 's32[1]{0}', space=sflag, size = 0x4, scoped, tag = 'scoped memory for tpu_custom_call.1']
    #allocation4 [shape = 's32[1]{0}', space=sflag, size = 0x4, scoped, tag = 'scoped memory for tpu_custom_call.1']
    #allocation5 [shape = 'u8[8192]{0}', space=vmem, size = 0x2000, scoped, tag = 'input window, operand 1, single buffered']
    #allocation6 [shape = 's32[1]{0}', space=sflag, size = 0x4, scoped, tag = 'scoped memory for tpu_custom_call.1']
    #allocation7 [shape = 'u8[131072]{0}', space=vmem, size = 0x20000, scoped, tag = 'input window, operand 2, single buffered']
    #allocation8 [shape = 'u8[8192]{0}', space=vmem, size = 0x2000, scoped, tag = 'output window, operand 0, single buffered']
    %11 = vsyncpa [#allocation3], 0
    %12 = vsyncpa [#allocation6], 0
    %13 = vsyncpa [#allocation4], 0
    // Predicated region
    $region2: #{tpu_custom_call.1} parent=1 // pred_check
      _
    $region3: #{tpu_custom_call.1} parent=1 // pred_check_branch
      %15 = sbr.rel (0) target = $region5
    $region4: #{tpu_custom_call.1} parent=1 // pred_region
      %17 = vsyncadd [#allocation3], 0
      %s18 = sshll.u32 %s0, 4
      %s19 = int_to_ptr.hbm [resolvable:$true] %s18
      %s20 = sshll.u32 [#allocation2], 4
      %s21 = int_to_ptr.vmem [resolvable:$true] %s20
      %26 = dma.hbm_to_vmem [thread:$0]  %s19, 1024, %s21, [#allocation3], 512, 512, 32
    $region5: #{tpu_custom_call.1} parent=1 // pred_fallthru
      _
    // Predicated region
    $region6: #{tpu_custom_call.1} parent=1 // pred_check
      _
    $region7: #{tpu_custom_call.1} parent=1 // pred_check_branch
      %28 = sbr.rel (0) target = $region9
    $region8: #{tpu_custom_call.1} parent=1 // pred_region
      %30 = vsyncadd [#allocation6], 0
      %s31 = sshll.u32 %s1, 4
      %s32 = int_to_ptr.hbm [resolvable:$true] %s31
      %s33 = sshll.u32 [#allocation5], 4
      %s34 = int_to_ptr.vmem [resolvable:$true] %s33
      %39 = dma.hbm_to_vmem [thread:$0]  %s32, 256, %s34, [#allocation6], 128, 128, 8
    $region9: #{tpu_custom_call.1} parent=1 // pred_fallthru
      _
    // Predicated region
    $region10: #{tpu_custom_call.1} parent=1 // pred_check
      _
    $region11: #{tpu_custom_call.1} parent=1 // pred_check_branch
      %41 = sbr.rel (0) target = $region13
    $region12: #{tpu_custom_call.1} parent=1 // pred_region
      %43 = vsyncadd [#allocation6], 0
      %s44 = sshll.u32 %s2, 4
      %s45 = int_to_ptr.hbm [resolvable:$true] %s44
      %s46 = sshll.u32 [#allocation7], 4
      %s47 = int_to_ptr.vmem [resolvable:$true] %s46
      %52 = dma.hbm_to_vmem [thread:$0]  %s45, 4096, %s47, [#allocation6], 64, 64, 4
    $region13: #{tpu_custom_call.1} parent=1 // pred_fallthru
      _
    // Predicated region
    $region14: #{tpu_custom_call.1} parent=1 // pred_check
      _
    $region15: #{tpu_custom_call.1} parent=1 // pred_check_branch
      %54 = sbr.rel (0) target = $region17
    $region16: #{tpu_custom_call.1} parent=1 // pred_region
      _
    $region17: #{tpu_custom_call.1} parent=1 // pred_fallthru
      _
    // Predicated region
    $region18: #{tpu_custom_call.1} parent=1 // pred_check
      _
    $region19: #{tpu_custom_call.1} parent=1 // pred_check_branch
      %56 = sbr.rel (0) target = $region21
    $region20: #{tpu_custom_call.1} parent=1 // pred_region
      _
    $region21: #{tpu_custom_call.1} parent=1 // pred_fallthru
      _
    // Predicated region
    $region22: #{tpu_custom_call.1} parent=1 // pred_check
      _
    $region23: #{tpu_custom_call.1} parent=1 // pred_check_branch
      %58 = sbr.rel (0) target = $region25
    $region24: #{tpu_custom_call.1} parent=1 // pred_region
      _
    $region25: #{tpu_custom_call.1} parent=1 // pred_fallthru
      _
    // Predicated region
    $region26: #{tpu_custom_call.1} parent=1 // pred_check
      _
    $region27: #{tpu_custom_call.1} parent=1 // pred_check_branch
      %60 = sbr.rel (0) target = $region29
    $region28: #{tpu_custom_call.1} parent=1 // pred_region
      %62 = dma.done [#allocation3], 1024
    $region29: #{tpu_custom_call.1} parent=1 // pred_fallthru
      _
    // Predicated region
    $region30: #{tpu_custom_call.1} parent=1 // pred_check
      _
    $region31: #{tpu_custom_call.1} parent=1 // pred_check_branch
      %64 = sbr.rel (0) target = $region33
    $region32: #{tpu_custom_call.1} parent=1 // pred_region
      %66 = dma.done [#allocation6], 256
    $region33: #{tpu_custom_call.1} parent=1 // pred_fallthru
      _
    // Predicated region
    $region34: #{tpu_custom_call.1} parent=1 // pred_check
      _
    $region35: #{tpu_custom_call.1} parent=1 // pred_check_branch
      %68 = sbr.rel (0) target = $region37
    $region36: #{tpu_custom_call.1} parent=1 // pred_region
      %70 = dma.done [#allocation6], 4096
    $region37: #{tpu_custom_call.1} parent=1 // pred_fallthru
      _
    %v71 = vld [vmem:[#allocation2] sm:$0xff]
    %v72 = vld [vmem:[#allocation2 + $0x8] sm:$0xff]
    %v73 = vld [vmem:[#allocation2 + $0x10] sm:$0xff]
    %v74 = vld [vmem:[#allocation2 + $0x18] sm:$0xff]
    %v75 = vld [vmem:[#allocation2 + $0x20] sm:$0xff]
    %v76 = vld [vmem:[#allocation2 + $0x28] sm:$0xff]
    %v77 = vld [vmem:[#allocation2 + $0x30] sm:$0xff]
    %v78 = vld [vmem:[#allocation2 + $0x38] sm:$0xff]
    %v79 = vpack.c.bf16 %v75, %v71
    %v80 = vpack.c.bf16 %v76, %v72
    %v81 = vpack.c.bf16 %v77, %v73
    %v82 = vpack.c.bf16 %v78, %v74
    %v83 = vld [vmem:[#allocation7] sm:$0xf]
    %v84 = vld [vmem:[#allocation7 + $0x4] sm:$0xf]
    %v85 = vld [vmem:[#allocation7 + $0x8] sm:$0xf]
    %v86 = vld [vmem:[#allocation7 + $0xc] sm:$0xf]
    %v87 = vld [vmem:[#allocation7 + $0x10] sm:$0xf]
    %v88 = vld [vmem:[#allocation7 + $0x14] sm:$0xf]
    %v89 = vld [vmem:[#allocation7 + $0x18] sm:$0xf]
    %v90 = vld [vmem:[#allocation7 + $0x1c] sm:$0xf]
    %v91 = vld [vmem:[#allocation7 + $0x20] sm:$0xf]
    %v92 = vld [vmem:[#allocation7 + $0x24] sm:$0xf]
    %v93 = vld [vmem:[#allocation7 + $0x28] sm:$0xf]
    %v94 = vld [vmem:[#allocation7 + $0x2c] sm:$0xf]
    %v95 = vld [vmem:[#allocation7 + $0x30] sm:$0xf]
    %v96 = vld [vmem:[#allocation7 + $0x34] sm:$0xf]
    %v97 = vld [vmem:[#allocation7 + $0x38] sm:$0xf]
    %v98 = vld [vmem:[#allocation7 + $0x3c] sm:$0xf]
    %v99 = vld [vmem:[#allocation7 + $0x40] sm:$0xf]
    %v100 = vld [vmem:[#allocation7 + $0x44] sm:$0xf]
    %v101 = vld [vmem:[#allocation7 + $0x48] sm:$0xf]
    %v102 = vld [vmem:[#allocation7 + $0x4c] sm:$0xf]
    %v103 = vld [vmem:[#allocation7 + $0x50] sm:$0xf]
    %v104 = vld [vmem:[#allocation7 + $0x54] sm:$0xf]
    %v105 = vld [vmem:[#allocation7 + $0x58] sm:$0xf]
    %v106 = vld [vmem:[#allocation7 + $0x5c] sm:$0xf]
    %v107 = vld [vmem:[#allocation7 + $0x60] sm:$0xf]
    %v108 = vld [vmem:[#allocation7 + $0x64] sm:$0xf]
    %v109 = vld [vmem:[#allocation7 + $0x68] sm:$0xf]
    %v110 = vld [vmem:[#allocation7 + $0x6c] sm:$0xf]
    %v111 = vld [vmem:[#allocation7 + $0x70] sm:$0xf]
    %v112 = vld [vmem:[#allocation7 + $0x74] sm:$0xf]
    %v113 = vld [vmem:[#allocation7 + $0x78] sm:$0xf]
    %v114 = vld [vmem:[#allocation7 + $0x7c] sm:$0xf]
    %v115 = vld [vmem:[#allocation7 + $0x80] sm:$0xf]
    %v116 = vld [vmem:[#allocation7 + $0x84] sm:$0xf]
    %v117 = vld [vmem:[#allocation7 + $0x88] sm:$0xf]
    %v118 = vld [vmem:[#allocation7 + $0x8c] sm:$0xf]
    %v119 = vld [vmem:[#allocation7 + $0x90] sm:$0xf]
    %v120 = vld [vmem:[#allocation7 + $0x94] sm:$0xf]
    %v121 = vld [vmem:[#allocation7 + $0x98] sm:$0xf]
    %v122 = vld [vmem:[#allocation7 + $0x9c] sm:$0xf]
    %v123 = vld [vmem:[#allocation7 + $0xa0] sm:$0xf]
    %v124 = vld [vmem:[#allocation7 + $0xa4] sm:$0xf]
    %v125 = vld [vmem:[#allocation7 + $0xa8] sm:$0xf]
    %v126 = vld [vmem:[#allocation7 + $0xac] sm:$0xf]
    %v127 = vld [vmem:[#allocation7 + $0xb0] sm:$0xf]
    %v128 = vld [vmem:[#allocation7 + $0xb4] sm:$0xf]
    %v129 = vld [vmem:[#allocation7 + $0xb8] sm:$0xf]
    %v130 = vld [vmem:[#allocation7 + $0xbc] sm:$0xf]
    %v131 = vld [vmem:[#allocation7 + $0xc0] sm:$0xf]
    %v132 = vld [vmem:[#allocation7 + $0xc4] sm:$0xf]
    %v133 = vld [vmem:[#allocation7 + $0xc8] sm:$0xf]
    %v134 = vld [vmem:[#allocation7 + $0xcc] sm:$0xf]
    %v135 = vld [vmem:[#allocation7 + $0xd0] sm:$0xf]
    %v136 = vld [vmem:[#allocation7 + $0xd4] sm:$0xf]
    %v137 = vld [vmem:[#allocation7 + $0xd8] sm:$0xf]
    %v138 = vld [vmem:[#allocation7 + $0xdc] sm:$0xf]
    %v139 = vld [vmem:[#allocation7 + $0xe0] sm:$0xf]
    %v140 = vld [vmem:[#allocation7 + $0xe4] sm:$0xf]
    %v141 = vld [vmem:[#allocation7 + $0xe8] sm:$0xf]
    %v142 = vld [vmem:[#allocation7 + $0xec] sm:$0xf]
    %v143 = vld [vmem:[#allocation7 + $0xf0] sm:$0xf]
    %v144 = vld [vmem:[#allocation7 + $0xf4] sm:$0xf]
    %v145 = vld [vmem:[#allocation7 + $0xf8] sm:$0xf]
    %v146 = vld [vmem:[#allocation7 + $0xfc] sm:$0xf]
    %v147 = vld [vmem:[%s3] sm:$0x1]
    %v148 = vld [vmem:[%s4] sm:$0x1]
    %v149 = vld [vmem:[%s5] sm:$0x1]
    %v151 = vperm.slane %v147, 0
    %v217 = vunpack.c.l.b16 %v83
    %v218 = vunpack.c.l.b16 %v84
    %v219 = vunpack.c.l.b16 %v85
    %v220 = vunpack.c.l.b16 %v86
    %v221 = vunpack.c.l.b16 %v87
    %v222 = vunpack.c.l.b16 %v88
    %v223 = vunpack.c.l.b16 %v89
    %v224 = vunpack.c.l.b16 %v90
    %v225 = vunpack.c.l.b16 %v91
    %v226 = vunpack.c.l.b16 %v92
    %v227 = vunpack.c.l.b16 %v93
    %v228 = vunpack.c.l.b16 %v94
    %v229 = vunpack.c.l.b16 %v95
    %v230 = vunpack.c.l.b16 %v96
    %v231 = vunpack.c.l.b16 %v97
    %v232 = vunpack.c.l.b16 %v98
    %v233 = vunpack.c.l.b16 %v99
    %v234 = vunpack.c.l.b16 %v100
    %v235 = vunpack.c.l.b16 %v101
    %v236 = vunpack.c.l.b16 %v102
    %v237 = vunpack.c.l.b16 %v103
    %v238 = vunpack.c.l.b16 %v104
    %v239 = vunpack.c.l.b16 %v105
    %v240 = vunpack.c.l.b16 %v106
    %v241 = vunpack.c.l.b16 %v107
    %v242 = vunpack.c.l.b16 %v108
    %v243 = vunpack.c.l.b16 %v109
    %v244 = vunpack.c.l.b16 %v110
    %v245 = vunpack.c.l.b16 %v111
    %v246 = vunpack.c.l.b16 %v112
    %v247 = vunpack.c.l.b16 %v113
    %v248 = vunpack.c.l.b16 %v114
    %v249 = vunpack.c.l.b16 %v115
    %v250 = vunpack.c.l.b16 %v116
    %v251 = vunpack.c.l.b16 %v117
    %v252 = vunpack.c.l.b16 %v118
    %v253 = vunpack.c.l.b16 %v119
    %v254 = vunpack.c.l.b16 %v120
    %v255 = vunpack.c.l.b16 %v121
    %v256 = vunpack.c.l.b16 %v122
    %v257 = vunpack.c.l.b16 %v123
    %v258 = vunpack.c.l.b16 %v124
    %v259 = vunpack.c.l.b16 %v125
    %v260 = vunpack.c.l.b16 %v126
    %v261 = vunpack.c.l.b16 %v127
    %v262 = vunpack.c.l.b16 %v128
    %v263 = vunpack.c.l.b16 %v129
    %v264 = vunpack.c.l.b16 %v130
    %v265 = vunpack.c.l.b16 %v131
    %v266 = vunpack.c.l.b16 %v132
    %v267 = vunpack.c.l.b16 %v133
    %v268 = vunpack.c.l.b16 %v134
    %v269 = vunpack.c.l.b16 %v135
    %v270 = vunpack.c.l.b16 %v136
    %v271 = vunpack.c.l.b16 %v137
    %v272 = vunpack.c.l.b16 %v138
    %v273 = vunpack.c.l.b16 %v139
    %v274 = vunpack.c.l.b16 %v140
    %v275 = vunpack.c.l.b16 %v141
    %v276 = vunpack.c.l.b16 %v142
    %v277 = vunpack.c.l.b16 %v143
    %v278 = vunpack.c.l.b16 %v144
    %v279 = vunpack.c.l.b16 %v145
    %v280 = vunpack.c.l.b16 %v146
    %v281 = vpack.c.b16 %v218, %v217
    %v282 = vpack.c.b16 %v220, %v219
    %v283 = vpack.c.b16 %v222, %v221
    %v284 = vpack.c.b16 %v224, %v223
    %v285 = vpack.c.b16 %v226, %v225
    %v286 = vpack.c.b16 %v228, %v227
    %v287 = vpack.c.b16 %v230, %v229
    %v288 = vpack.c.b16 %v232, %v231
    %v289 = vpack.c.b16 %v234, %v233
    %v290 = vpack.c.b16 %v236, %v235
    %v291 = vpack.c.b16 %v238, %v237
    %v292 = vpack.c.b16 %v240, %v239
    %v293 = vpack.c.b16 %v242, %v241
    %v294 = vpack.c.b16 %v244, %v243
    %v295 = vpack.c.b16 %v246, %v245
    %v296 = vpack.c.b16 %v248, %v247
    %v297 = vpack.c.b16 %v250, %v249
    %v298 = vpack.c.b16 %v252, %v251
    %v299 = vpack.c.b16 %v254, %v253
    %v300 = vpack.c.b16 %v256, %v255
    %v301 = vpack.c.b16 %v258, %v257
    %v302 = vpack.c.b16 %v260, %v259
    %v303 = vpack.c.b16 %v262, %v261
    %v304 = vpack.c.b16 %v264, %v263
    %v305 = vpack.c.b16 %v266, %v265
    %v306 = vpack.c.b16 %v268, %v267
    %v307 = vpack.c.b16 %v270, %v269
    %v308 = vpack.c.b16 %v272, %v271
    %v309 = vpack.c.b16 %v274, %v273
    %v310 = vpack.c.b16 %v276, %v275
    %v311 = vpack.c.b16 %v278, %v277
    %v312 = vpack.c.b16 %v280, %v279
    %345 = vmatpush.bf16.msra.mxu0 %v288
    %346 = vmatpush.bf16.msra.mxu0 %v287
    %347 = vmatpush.bf16.msra.mxu0 %v286
    %348 = vmatpush.bf16.msra.mxu0 %v285
    %349 = vmatpush.bf16.msra.mxu0 %v284
    %350 = vmatpush.bf16.msra.mxu0 %v283
    %351 = vmatpush.bf16.msra.mxu0 %v282
    %352 = vmatpush.bf16.msra.mxu0 %v281
    %353 = vmatmul.bf16.gmra.mxu0 %v79
    %v354 = vpop.f32.mrf.mxu0
    %v355 = vadd.f32 %v151, %v354
    %v356 = vpop.f32.mrf.mxu0
    %v357 = vadd.f32 %v151, %v356
    %358 = vdwg.mxu0
    %359 = vmatpush.bf16.msra.mxu0 %v296
    %360 = vmatpush.bf16.msra.mxu0 %v295
    %361 = vmatpush.bf16.msra.mxu0 %v294
    %362 = vmatpush.bf16.msra.mxu0 %v293
    %363 = vmatpush.bf16.msra.mxu0 %v292
    %364 = vmatpush.bf16.msra.mxu0 %v291
    %365 = vmatpush.bf16.msra.mxu0 %v290
    %366 = vmatpush.bf16.msra.mxu0 %v289
    %367 = vmatmul.bf16.gmra.mxu0 %v80
    %v368 = vpop.f32.mrf.mxu0
    %v369 = vadd.f32 %v355, %v368
    %v370 = vpop.f32.mrf.mxu0
    %v371 = vadd.f32 %v357, %v370
    %372 = vdwg.mxu0
    %373 = vmatpush.bf16.msra.mxu0 %v304
    %374 = vmatpush.bf16.msra.mxu0 %v303
    %375 = vmatpush.bf16.msra.mxu0 %v302
    %376 = vmatpush.bf16.msra.mxu0 %v301
    %377 = vmatpush.bf16.msra.mxu0 %v300
    %378 = vmatpush.bf16.msra.mxu0 %v299
    %379 = vmatpush.bf16.msra.mxu0 %v298
    %380 = vmatpush.bf16.msra.mxu0 %v297
    %381 = vmatmul.bf16.gmra.mxu0 %v81
    %v382 = vpop.f32.mrf.mxu0
    %v383 = vadd.f32 %v369, %v382
    %v384 = vpop.f32.mrf.mxu0
    %v385 = vadd.f32 %v371, %v384
    %386 = vdwg.mxu0
    %387 = vmatpush.bf16.msra.mxu0 %v312
    %388 = vmatpush.bf16.msra.mxu0 %v311
    %389 = vmatpush.bf16.msra.mxu0 %v310
    %390 = vmatpush.bf16.msra.mxu0 %v309
    %391 = vmatpush.bf16.msra.mxu0 %v308
    %392 = vmatpush.bf16.msra.mxu0 %v307
    %393 = vmatpush.bf16.msra.mxu0 %v306
    %394 = vmatpush.bf16.msra.mxu0 %v305
    %395 = vmatmul.bf16.gmra.mxu0 %v82
    %v396 = vpop.f32.mrf.mxu0
    %v397 = vadd.f32 %v383, %v396
    %v398 = vpop.f32.mrf.mxu0
    %v399 = vadd.f32 %v385, %v398
    %400 = vdwg.mxu0
    %v401 = vld [vmem:[#allocation5] sm:$0xff]
    %v402 = vld [vmem:[#allocation5 + $0x8] sm:$0xff]
    %v403 = vadd.f32 %v397, %v401
    %v404 = vadd.f32 %v399, %v402
    %405 = vadd.xlane.f32.xlu0 %v403
    %v406 = vpop.xlane.xlu0 %405
    %407 = vadd.xlane.f32.xlu0 %v404
    %v408 = vpop.xlane.xlu0 %407
    %v409 = vrcp.pop 128.0
    %v410 = vmul.f32 128.0, %v409
    %v411 = vsub.f32 1.0, %v410
    %v412 = vmul.f32 %v409, %v411
    %v413 = vadd.f32 %v409, %v412
    %vm414 = vweird.f32 %v409
    %v415 = vsel %vm414, %v409, %v413
    %v416 = vmul.f32 %v406, %v415
    %v417 = vmul.f32 %v408, %v415
    %v418 = vsub.f32 %v403, %v416
    %v419 = vsub.f32 %v404, %v417
    %v420 = vmul.f32 %v418, %v418
    %v421 = vmul.f32 %v419, %v419
    %422 = vadd.xlane.f32.xlu0 %v420
    %v423 = vpop.xlane.xlu0 %422
    %424 = vadd.xlane.f32.xlu0 %v421
    %v425 = vpop.xlane.xlu0 %424
    %v426 = vmul.f32 %v423, %v415
    %v427 = vmul.f32 %v425, %v415
    %v428 = vadd.f32 %v426, 1e-12
    %v429 = vadd.f32 %v427, 1e-12
    %v430 = vrsqrt.pop %v428
    %v431 = vmul.f32 %v430, %v428
    %v432 = vmul.f32 %v431, %v430
    %v433 = vmul.f32 0.5, %v432
    %v434 = vsub.f32 1.5, %v433
    %v435 = vmul.f32 %v430, %v434
    %vm436 = vweird.f32 %v428
    %vm437 = vweird.f32 %v430
    %vm438 = vmor %vm436, %vm437
    %v439 = vsel %vm438, %v430, %v435
    %v440 = vrsqrt.pop %v429
    %v441 = vmul.f32 %v440, %v429
    %v442 = vmul.f32 %v441, %v440
    %v443 = vmul.f32 0.5, %v442
    %v444 = vsub.f32 1.5, %v443
    %v445 = vmul.f32 %v440, %v444
    %vm446 = vweird.f32 %v429
    %vm447 = vweird.f32 %v440
    %vm448 = vmor %vm446, %vm447
    %v449 = vsel %vm448, %v440, %v445
    %v450 = vmul.f32 %v418, %v439
    %v451 = vmul.f32 %v419, %v449
    %v453 = vperm.slane %v148, 0
    %v455 = vmul.f32 %v450, %v453
    %v456 = vmul.f32 %v451, %v453
    %v458 = vperm.slane %v149, 0
    %v460 = vadd.f32 %v455, %v458
    %v461 = vadd.f32 %v456, %v458
    %462 = vst [vmem:[#allocation8] sm:$0xff] %v460
    %463 = vst [vmem:[#allocation8 + $0x8] sm:$0xff] %v461
    // Predicated region
    $region38: #{tpu_custom_call.1} parent=1 // pred_check
      _
    $region39: #{tpu_custom_call.1} parent=1 // pred_check_branch
      %465 = sbr.rel (0) target = $region41
    $region40: #{tpu_custom_call.1} parent=1 // pred_region
      %467 = vsyncadd [#allocation4], 0
      %s468 = sshll.u32 [#allocation8], 4
      %s469 = int_to_ptr.vmem [resolvable:$true] %s468
      %s470 = sshll.u32 %s6, 4
      %s471 = int_to_ptr.hbm [resolvable:$true] %s470
      %476 = dma.vmem_to_hbm [thread:$0]  %s469, 256, %s471, [#allocation4], 128, 128, 8
    $region41: #{tpu_custom_call.1} parent=1 // pred_fallthru
      _
    // Predicated region
    $region42: #{tpu_custom_call.1} parent=1 // pred_check
      _
    $region43: #{tpu_custom_call.1} parent=1 // pred_check_branch
      %478 = sbr.rel (0) target = $region45
    $region44: #{tpu_custom_call.1} parent=1 // pred_region
      %480 = dma.done [#allocation4], 256
    $region45: #{tpu_custom_call.1} parent=1 // pred_fallthru
      _
    %481 = vsyncpa [#allocation3], 1
    %482 = vsyncpa [#allocation6], 1
    %483 = vsyncpa [#allocation4], 1

</llo_original>
